<compile_context>
chip_gen: v6e
topology: v6e:2x2x1
jax: 0.10.0
libtpu: 0.0.40
codegen_flags: <defaults>
</compile_context>

<pallas_src>
import functools

import jax
import jax.numpy as jnp
from jax import lax
from jax.experimental import pallas as pl
from jax.experimental.pallas import tpu as pltpu


def _fused_kernel(idx_ref, ctx_ref, w_ref, out_ref, pooled_ref, *,
                  tile_rows, compute_dtype):
    # idx_ref:    (B,)             int32 class indices, SMEM (scalar prefetch)
    # ctx_ref:    (TM, K, D)       interleaved context rows (row 2m = normal_m,
    #                              row 2m+1 = anomaly_m), compute dtype
    # w_ref:      (D, C)           projection matrix, pre-scaled by 1/K
    # out_ref:    (B, 2, C)        gathered per-sample text features (f32)
    # pooled_ref: (2*M, C)         persistent VMEM scratch (f32)
    g = pl.program_id(0)
    B = out_ref.shape[0]

    # 1) Pool over K BEFORE projecting (linearity of the mean); the 1/K scale
    #    is folded into W host-side, so this is a plain sum. Pooling stays in
    #    f32 (v5e has no bf16 VPU); only MXU operands use compute_dtype.
    ctx_sum = jnp.sum(ctx_ref[...].astype(jnp.float32), axis=1)      # (TM, D)

    # 2) One MXU matmul per row tile, f32 accumulation, written at this tile's
    #    absolute offset in the persistent pooled scratch.
    feats = jnp.dot(ctx_sum.astype(compute_dtype), w_ref[...],
                    preferred_element_type=jnp.float32)              # (TM, C)
    row0 = pl.multiple_of(g * tile_rows, tile_rows)
    pooled_ref[pl.ds(row0, tile_rows), :] = feats

    # 3) Last step only: per-sample class gather. Interleaved layout means the
    #    (normal, anomaly) pair of class i is the contiguous rows [2i, 2i+1]:
    #    one (2, C) load + one (2, C) store per sample, no concatenate.
    @pl.when(g == pl.num_programs(0) - 1)
    def _gather():
        def body(b, carry):
            i = idx_ref[b]
            out_ref[b] = pooled_ref[pl.ds(2 * i, 2), :].astype(out_ref.dtype)
            return carry
        lax.fori_loop(0, B, body, 0, unroll=True)


def prompt_text_encoder_forward(ctx, w, cls_indices, M,
                                compute_dtype=jnp.float32, tile_rows=8):
    """ctx: (2, M*K, D), w: (D, C), cls_indices: (B,) int32 -> ((B, 2, C), [])."""
    two, MK, D = ctx.shape
    assert two == 2
    assert MK % M == 0, "number of prompt rows must be divisible by num classes"
    K = MK // M
    C = w.shape[1]
    B = cls_indices.shape[0]

    # Host-side relabel to interleaved (M, 2, K, D) order: pooled rows 2m/2m+1
    # hold (normal_m, anomaly_m), so the in-kernel gather is a contiguous
    # 2-row slice per sample.
    ctx_i = jnp.transpose(ctx.reshape(2, M, K, D), (1, 0, 2, 3))
    ctx_i = ctx_i.reshape(2 * M, K, D).astype(compute_dtype)
    # Fold the 1/K mean into W; cast MXU operands once in the wrapper
    # (bf16 halves HBM->VMEM DMA bytes on v6e/v7x).
    w_s = (w / K).astype(compute_dtype)

    two_m = 2 * M
    tile_rows = min(tile_rows, two_m)
    assert two_m % tile_rows == 0 and tile_rows % 8 == 0
    n_tiles = two_m // tile_rows

    kernel = functools.partial(_fused_kernel, tile_rows=tile_rows,
                               compute_dtype=compute_dtype)
    out = pl.pallas_call(
        kernel,
        out_shape=jax.ShapeDtypeStruct((B, 2, C), jnp.float32),
        grid_spec=pltpu.PrefetchScalarGridSpec(
            num_scalar_prefetch=1,                # cls_indices -> SMEM
            grid=(n_tiles,),                      # tile the 2M row axis
            in_specs=[
                # ctx tile: double-buffered by BlockSpec -> DMA overlaps compute
                pl.BlockSpec((tile_rows, K, D), lambda g, idx: (g, 0, 0)),
                # W: constant block index -> resident across all grid steps
                pl.BlockSpec((D, C), lambda g, idx: (0, 0)),
            ],
            # Output block constant across the grid axis; written on last step.
            out_specs=pl.BlockSpec((B, 2, C), lambda g, idx: (0, 0, 0)),
            scratch_shapes=[pltpu.VMEM((two_m, C), jnp.float32)],
        ),
        compiler_params=pltpu.CompilerParams(
            # pooled scratch + in-kernel gather => axis must stay 'arbitrary'
            dimension_semantics=("arbitrary",)),
    )(cls_indices, ctx_i, w_s)

    text_features_maps = []   # text_encoder is None branch -> empty list
    return out, text_features_maps


if __name__ == "__main__":
    # M classes, K prompts per (class, state), context dim D, feature dim C, batch B.
    # Lane/sublane-aligned small shapes: D, C multiples of 128; 2*M multiple of 8
    # (with M=8 the grid has 2 steps, exercising the tiled/pipelined path).
    M, K, D, C, B = 8, 8, 128, 128, 4
    class_names = ["bottle", "cable", "capsule", "carpet",
                   "grid", "hazelnut", "leather", "metal_nut"]
    # TODO(synk): class-name string -> index dict lookup is host-side Python glue
    # (no tensor equivalent); indices are handed to the kernel as int32.
    name_to_idx = {n: i for i, n in enumerate(class_names)}

    key = jax.random.PRNGKey(0)
    k_ctx, k_w = jax.random.split(key)
    # deterministic synthetic "prompt learner" parameters
    ctx = jax.random.normal(k_ctx, (2, M * K, D), jnp.float32) * 0.02
    w = jax.random.normal(k_w, (D, C), jnp.float32) * 0.02

    cls_names = ["carpet", "bottle", "hazelnut", "cable"]
    cls_indices = jnp.array([name_to_idx.get(n, 0) for n in cls_names], jnp.int32)

    # Pure-JAX reference mirroring the PyTorch forward exactly
    # (project -> pool over K -> permute(1,0,2) -> gather by class index).
    feats_ref = ctx.reshape(2 * M * K, D) @ w                  # (2*M*K, C)
    pooled_ref = feats_ref.reshape(2, M, K, C).mean(axis=2)    # (2, M, C)
    pooled_ref = jnp.transpose(pooled_ref, (1, 0, 2))          # (M, 2, C)
    batch_ref = pooled_ref[cls_indices]                        # (B, 2, C)

    # f32 path: strict check against the reference.
    text_features, text_features_maps = prompt_text_encoder_forward(
        ctx, w, cls_indices, M, compute_dtype=jnp.float32)
    text_features = jax.block_until_ready(text_features)
    assert text_features.shape == (B, 2, C)
    assert text_features_maps == []
    assert jnp.allclose(text_features, batch_ref, atol=1e-5, rtol=1e-5)

    # bf16 MXU-operand path (the v6e/v7x-preferred setting): loose tolerance.
    text_features_bf16, _ = prompt_text_encoder_forward(
        ctx, w, cls_indices, M, compute_dtype=jnp.bfloat16)
    text_features_bf16 = jax.block_until_ready(text_features_bf16)
    assert jnp.allclose(text_features_bf16, batch_ref, atol=1e-4, rtol=5e-2)

    print("KERNEL_OK")
</pallas_src>

<mosaic_0001>
module attributes {stable_mosaic.version = 11 : i64} {
  func.func @_fused_kernel(%arg0: i32, %arg1: memref<4xi32, #tpu.memory_space<smem>>, %arg2: memref<8x8x128xf32, #tpu.memory_space<vmem>>, %arg3: memref<128x128xf32, #tpu.memory_space<vmem>>, %arg4: memref<4x2x128xf32, #tpu.memory_space<vmem>>, %arg5: memref<16x128xf32, #tpu.memory_space<vmem>>) attributes {dimension_semantics = [#tpu.dimension_semantics<arbitrary>], iteration_bounds = array<i64: 2>, scalar_prefetch = 1 : i64, scratch_operands = 1 : i64, tpu.core_type = #tpu.core_type<tc>, window_params = [{transform_indices = @transform_0, window_bounds = array<i64: 8, 8, 128>}, {pipeline_mode = #tpu.pipeline_mode<synchronous>, transform_indices = @transform_1, window_bounds = array<i64: 128, 128>}, {pipeline_mode = #tpu.pipeline_mode<synchronous>, transform_indices = @transform_2, window_bounds = array<i64: 4, 2, 128>}]} {
    %c0 = arith.constant 0 : index
    %c0_0 = arith.constant 0 : index
    %c0_1 = arith.constant 0 : index
    %0 = vector.load %arg2[%c0, %c0_0, %c0_1] : memref<8x8x128xf32, #tpu.memory_space<vmem>>, vector<8x8x128xf32>
    %cst = arith.constant dense<0.000000e+00> : vector<8x128xf32>
    %1 = vector.multi_reduction <add>, %0, %cst [1] : vector<8x8x128xf32> to vector<8x128xf32>
    %c0_2 = arith.constant 0 : index
    %c0_3 = arith.constant 0 : index
    %2 = vector.load %arg3[%c0_2, %c0_3] : memref<128x128xf32, #tpu.memory_space<vmem>>, vector<128x128xf32>
    %cst_4 = arith.constant dense<0.000000e+00> : vector<8x128xf32>
    %3 = tpu.matmul %1, %2, %cst_4 {dimension_numbers = #tpu.dot_dimension_numbers<[1], [0], [0], [1], [0, 0, 1, 1], [], []>} : vector<8x128xf32>, vector<128x128xf32>, vector<8x128xf32> -> vector<8x128xf32>
    %c8_i32 = arith.constant 8 : i32
    %4 = arith.muli %arg0, %c8_i32 : i32
    %5 = tpu.assume_multiple %4, 8 : i32
    %6 = arith.index_cast %5 : i32 to index
    %c0_5 = arith.constant 0 : index
    %7 = vector.load %arg5[%6, %c0_5] : memref<16x128xf32, #tpu.memory_space<vmem>>, vector<8x128xf32>
    tpu.vector_store %arg5[%6, %c0_5], %3 {strides = array<i32>} : memref<16x128xf32, #tpu.memory_space<vmem>>, vector<8x128xf32>,
    %c1_i32 = arith.constant 1 : i32
    %8 = arith.cmpi eq, %arg0, %c1_i32 : i32
    %9 = arith.extui %8 : i1 to i32
    %c0_i32 = arith.constant 0 : i32
    %10 = arith.cmpi ne, %9, %c0_i32 : i32
    scf.if %10 {
      %c0_i32_6 = arith.constant 0 : i32
      %11 = arith.index_cast %c0_i32_6 : i32 to index
      %12 = memref.load %arg1[%11] : memref<4xi32, #tpu.memory_space<smem>>
      %c2_i32 = arith.constant 2 : i32
      %13 = arith.muli %c2_i32, %12 : i32
      %14 = arith.index_cast %13 : i32 to index
      %c0_7 = arith.constant 0 : index
      %15 = vector.load %arg5[%14, %c0_7] : memref<16x128xf32, #tpu.memory_space<vmem>>, vector<2x128xf32>
      %16 = arith.index_cast %c0_i32_6 : i32 to index
      %c0_8 = arith.constant 0 : index
      %c0_9 = arith.constant 0 : index
      %17 = vector.load %arg4[%16, %c0_8, %c0_9] : memref<4x2x128xf32, #tpu.memory_space<vmem>>, vector<1x2x128xf32>
      %18 = vector.shape_cast %17 : vector<1x2x128xf32> to vector<2x128xf32>
      %19 = vector.shape_cast %15 : vector<2x128xf32> to vector<1x2x128xf32>
      tpu.vector_store %arg4[%16, %c0_8, %c0_9], %19 {strides = array<i32>} : memref<4x2x128xf32, #tpu.memory_space<vmem>>, vector<1x2x128xf32>,
      %c1_i32_10 = arith.constant 1 : i32
      %20 = arith.index_cast %c1_i32_10 : i32 to index
      %21 = memref.load %arg1[%20] : memref<4xi32, #tpu.memory_space<smem>>
      %c2_i32_11 = arith.constant 2 : i32
      %22 = arith.muli %c2_i32_11, %21 : i32
      %23 = arith.index_cast %22 : i32 to index
      %c0_12 = arith.constant 0 : index
      %24 = vector.load %arg5[%23, %c0_12] : memref<16x128xf32, #tpu.memory_space<vmem>>, vector<2x128xf32>
      %25 = arith.index_cast %c1_i32_10 : i32 to index
      %c0_13 = arith.constant 0 : index
      %c0_14 = arith.constant 0 : index
      %26 = vector.load %arg4[%25, %c0_13, %c0_14] : memref<4x2x128xf32, #tpu.memory_space<vmem>>, vector<1x2x128xf32>
      %27 = vector.shape_cast %26 : vector<1x2x128xf32> to vector<2x128xf32>
      %28 = vector.shape_cast %24 : vector<2x128xf32> to vector<1x2x128xf32>
      tpu.vector_store %arg4[%25, %c0_13, %c0_14], %28 {strides = array<i32>} : memref<4x2x128xf32, #tpu.memory_space<vmem>>, vector<1x2x128xf32>,
      %c2_i32_15 = arith.constant 2 : i32
      %29 = arith.index_cast %c2_i32_15 : i32 to index
      %30 = memref.load %arg1[%29] : memref<4xi32, #tpu.memory_space<smem>>
      %c2_i32_16 = arith.constant 2 : i32
      %31 = arith.muli %c2_i32_16, %30 : i32
      %32 = arith.index_cast %31 : i32 to index
      %c0_17 = arith.constant 0 : index
      %33 = vector.load %arg5[%32, %c0_17] : memref<16x128xf32, #tpu.memory_space<vmem>>, vector<2x128xf32>
      %34 = arith.index_cast %c2_i32_15 : i32 to index
      %c0_18 = arith.constant 0 : index
      %c0_19 = arith.constant 0 : index
      %35 = vector.load %arg4[%34, %c0_18, %c0_19] : memref<4x2x128xf32, #tpu.memory_space<vmem>>, vector<1x2x128xf32>
      %36 = vector.shape_cast %35 : vector<1x2x128xf32> to vector<2x128xf32>
      %37 = vector.shape_cast %33 : vector<2x128xf32> to vector<1x2x128xf32>
      tpu.vector_store %arg4[%34, %c0_18, %c0_19], %37 {strides = array<i32>} : memref<4x2x128xf32, #tpu.memory_space<vmem>>, vector<1x2x128xf32>,
      %c3_i32 = arith.constant 3 : i32
      %38 = arith.index_cast %c3_i32 : i32 to index
      %39 = memref.load %arg1[%38] : memref<4xi32, #tpu.memory_space<smem>>
      %c2_i32_20 = arith.constant 2 : i32
      %40 = arith.muli %c2_i32_20, %39 : i32
      %41 = arith.index_cast %40 : i32 to index
      %c0_21 = arith.constant 0 : index
      %42 = vector.load %arg5[%41, %c0_21] : memref<16x128xf32, #tpu.memory_space<vmem>>, vector<2x128xf32>
      %43 = arith.index_cast %c3_i32 : i32 to index
      %c0_22 = arith.constant 0 : index
      %c0_23 = arith.constant 0 : index
      %44 = vector.load %arg4[%43, %c0_22, %c0_23] : memref<4x2x128xf32, #tpu.memory_space<vmem>>, vector<1x2x128xf32>
      %45 = vector.shape_cast %44 : vector<1x2x128xf32> to vector<2x128xf32>
      %46 = vector.shape_cast %42 : vector<2x128xf32> to vector<1x2x128xf32>
      tpu.vector_store %arg4[%43, %c0_22, %c0_23], %46 {strides = array<i32>} : memref<4x2x128xf32, #tpu.memory_space<vmem>>, vector<1x2x128xf32>,
      %c4_i32 = arith.constant 4 : i32
    } else {
    }
    return
  }
  func.func @transform_0(%arg0: i32, %arg1: memref<4xi32, #tpu.memory_space<smem>>) -> (i32, i32, i32) {
    %c0_i32 = arith.constant 0 : i32
    %c0_i32_0 = arith.constant 0 : i32
    %c0_i32_1 = arith.constant 0 : i32
    return %arg0, %c0_i32, %c0_i32_0 : i32, i32, i32
  }
  func.func @transform_1(%arg0: i32, %arg1: memref<4xi32, #tpu.memory_space<smem>>) -> (i32, i32) {
    %c0_i32 = arith.constant 0 : i32
    %c0_i32_0 = arith.constant 0 : i32
    %c0_i32_1 = arith.constant 0 : i32
    return %c0_i32, %c0_i32_0 : i32, i32
  }
  func.func @transform_2(%arg0: i32, %arg1: memref<4xi32, #tpu.memory_space<smem>>) -> (i32, i32, i32) {
    %c0_i32 = arith.constant 0 : i32
    %c0_i32_0 = arith.constant 0 : i32
    %c0_i32_1 = arith.constant 0 : i32
    %c0_i32_2 = arith.constant 0 : i32
    return %c0_i32, %c0_i32_0, %c0_i32_1 : i32, i32, i32
  }
}

</mosaic_0001>

<llo_original>
// kernel: tpu_custom_call.1
$region0: #{tpu_custom_call.1}
  #allocation0 [shape = 'u32[]', space=smem, size = 0x4, offset = 0x4, fixed_abs, tag = 'smem constant byte address 0x4 - core index']
  #allocation1 [shape = 'u32[144,128]{1,0:T(1,128)}', space=vmem, size = 0x12000, scoped, tag = 'internal scratch']
  #allocation2 [shape = 'f32[16,128]{1,0:T(8,128)}', space=vmem, size = 0x2000, scoped, tag = 'scratch operand']
  #allocation3 [shape = 's32[1]{0}', space=sflag, size = 0x4, scoped, tag = 'scoped memory for tpu_custom_call.1']
  #allocation4 [shape = 'u8[512]{0}', space=smem, size = 0x200, scoped, tag = 'prefetched SMEM operand 0']
  %s0 = inlined_call_operand.hbm [shape: s32[4], index: 0, kind: input, shape index: {}]
  %s1 = inlined_call_operand.hbm [shape: f32[16,8,128], index: 1, kind: input, shape index: {}]
  %s2 = inlined_call_operand.hbm [shape: f32[128,128], index: 2, kind: input, shape index: {}]
  %s3 = inlined_call_operand.hbm [shape: f32[4,2,128], index: 3, kind: output, shape index: {}]
  %s4 = sld [smem:[#allocation0]]
  $region53: #{tpu_custom_call.1} parent=0
    _
  %s6 = ssub.s32 1, %s4
  %s7 = scalar_select 0, %s6, %s4
  %9 = dma.hbm_to_smem %s0, 16, [#allocation4], [#allocation3]
  %10 = dma.done [#allocation3], 16
  %11 = sfence
  $region1: #{tpu_custom_call.1} parent=0
    #allocation5 [shape = 'u8[65536]{0}', space=vmem, size = 0x10000, scoped, tag = 'input window, operand 1']
    #allocation6 [shape = 's32[2]{0}', space=sflag, size = 0x8, scoped, tag = 'scoped memory for tpu_custom_call.1']
    #allocation7 [shape = 's32[2]{0}', space=sflag, size = 0x8, scoped, tag = 'scoped memory for tpu_custom_call.1']
    #allocation8 [shape = 'u8[65536]{0}', space=vmem, size = 0x10000, scoped, tag = 'input window, operand 2, single buffered']
    #allocation9 [shape = 's32[1]{0}', space=sflag, size = 0x4, scoped, tag = 'scoped memory for tpu_custom_call.1']
    #allocation10 [shape = 'u8[4096]{0}', space=vmem, size = 0x1000, scoped, tag = 'output window, operand 0, single buffered']
    %12 = vsyncpa [#allocation6], 0
    %s13 = scalar_lea.sflag [#allocation6], 1
    %14 = vsyncpa %s13, 0
    %15 = vsyncpa [#allocation9], 0
    %16 = vsyncpa [#allocation7], 0
    loop: start=0, step=1, limit=4
    $region2: #{tpu_custom_call.1} parent=1 // loop_pre_header
      _
    $region3: #{tpu_custom_call.1} parent=1 // loop_header
      %s18 = sphi 0, %s22
      %p19 = scmp.ge.s32.totalorder %s18, 4
      %s28 = sphi 0, %s30
      %s31 = sphi 0, %s28
      %s32 = sphi 0, %s31
      %s48 = sphi 0, %s32
      %s52 = sphi 0, %s52
      %s54 = sphi 0, %s52
      %s55 = sphi 0, %s54
      %s69 = sphi 0, %s55
      %s73 = sphi 0, %s73
      %s75 = sphi 0, %s73
      %s76 = sphi 0, %s75
      %s90 = sphi 0, %s76
    $region4: #{tpu_custom_call.1} parent=1 // loop_header_branch
      %21 = sbr.rel (%p19) target = $region8
    $region5: #{tpu_custom_call.1} parent=1 // loop_body
      %s23 = ssub.s32 %s18, 1
      %s24 = ssub.s32 %s18, 2
      %s25 = sadd.s32 %s18, 1
      %s26 = ssub.s32 %s18, %s25
      %p27 = scmp.eq.s32.totalorder %s26, 0
      %s29 = sadd.s32 %s28, 1
      %s30 = scalar_select %p27, %s28, %s29
      %p33 = pneg %p27
      %p34 = scmp.eq.s32.totalorder %s18, 1
      %p35 = por %p33, %p34
      %p36 = scmp.ne.s32.totalorder %s28, %s31
      %p37 = scmp.eq.s32.totalorder %s18, 0
      %p38 = por %p36, %p37
      %p39 = scmp.ne.s32.totalorder %s28, %s31
      %p40 = scmp.eq.s32.totalorder %s23, 1
      %p41 = por %p39, %p40
      %p42 = scmp.ne.s32.totalorder %s31, %s32
      %p43 = scmp.eq.s32.totalorder %s23, 0
      %p44 = por %p42, %p43
      %p45 = scmp.ne.s32.totalorder %s31, %s32
      %p46 = scmp.eq.s32.totalorder %s24, 1
      %p47 = por %p45, %p46
      %p49 = scmp.ne.s32.totalorder %s32, %s48
      %p50 = scmp.eq.s32.totalorder %s24, 0
      %p51 = por %p49, %p50
      %s53 = sadd.s32 %s52, 1
      %p56 = scmp.eq.s32.totalorder %s18, 1
      %p57 = scmp.ne.s32.totalorder %s52, %s54
      %p58 = scmp.eq.s32.totalorder %s18, 0
      %p59 = por %p57, %p58
      %p60 = scmp.ne.s32.totalorder %s52, %s54
      %p61 = scmp.eq.s32.totalorder %s23, 1
      %p62 = por %p60, %p61
      %p63 = scmp.ne.s32.totalorder %s54, %s55
      %p64 = scmp.eq.s32.totalorder %s23, 0
      %p65 = por %p63, %p64
      %p66 = scmp.ne.s32.totalorder %s54, %s55
      %p67 = scmp.eq.s32.totalorder %s24, 1
      %p68 = por %p66, %p67
      %p70 = scmp.ne.s32.totalorder %s55, %s69
      %p71 = scmp.eq.s32.totalorder %s24, 0
      %p72 = por %p70, %p71
      %s74 = sadd.s32 %s73, 1
      %p77 = scmp.eq.s32.totalorder %s18, 1
      %p78 = scmp.ne.s32.totalorder %s73, %s75
      %p79 = scmp.eq.s32.totalorder %s18, 0
      %p80 = por %p78, %p79
      %p81 = scmp.ne.s32.totalorder %s73, %s75
      %p82 = scmp.eq.s32.totalorder %s23, 1
      %p83 = por %p81, %p82
      %p84 = scmp.ne.s32.totalorder %s75, %s76
      %p85 = scmp.eq.s32.totalorder %s23, 0
      %p86 = por %p84, %p85
      %p87 = scmp.ne.s32.totalorder %s75, %s76
      %p88 = scmp.eq.s32.totalorder %s24, 1
      %p89 = por %p87, %p88
      %p91 = scmp.ne.s32.totalorder %s76, %s90
      %p92 = scmp.eq.s32.totalorder %s24, 0
      %p93 = por %p91, %p92
      %p94 = scmp.le.s32.totalorder 1, %s18
      %p95 = scmp.lt.s32.totalorder %s18, 3
      %p96 = pnand %p94, %p95
      %p97 = pneg %p96
      // Predicated region
      $region9: #{tpu_custom_call.1} parent=5 // pred_check
        _
      $region10: #{tpu_custom_call.1} parent=5 // pred_check_branch
        %99 = sbr.rel (%p96) target = $region12
      $region11: #{tpu_custom_call.1} parent=5 // pred_region
        %s100 = ssub.s32 %s18, 1
        // Predicated region
        $region13: #{tpu_custom_call.1} parent=11 // pred_check
          %p101 = pneg %p65
        $region14: #{tpu_custom_call.1} parent=11 // pred_check_branch
          %103 = sbr.rel (%p101) target = $region16
        $region15: #{tpu_custom_call.1} parent=11 // pred_region
          %s105 = ssub.s32 2048, 2048
          %106 = vsyncadd [#allocation9], %s105
          %s107 = sshll.u32 [#allocation8], 4
          %s108 = int_to_ptr.vmem [resolvable:$true] %s107
          %113 = dma.hbm_to_vmem [thread:$0]  %s2, 2048, %s108, [#allocation9], 128, 128, 8
        $region16: #{tpu_custom_call.1} parent=11 // pred_fallthru
          _
      $region12: #{tpu_custom_call.1} parent=5 // pred_fallthru
        _
      %p114 = scmp.lt.s32.totalorder %s18, 2
      // Predicated region
      $region17: #{tpu_custom_call.1} parent=5 // pred_check
        %p115 = pneg %p114
      $region18: #{tpu_custom_call.1} parent=5 // pred_check_branch
        %117 = sbr.rel (%p115) target = $region20
      $region19: #{tpu_custom_call.1} parent=5 // pred_region
        // Predicated region
        $region21: #{tpu_custom_call.1} parent=19 // pred_check
          %p118 = pneg %p38
        $region22: #{tpu_custom_call.1} parent=19 // pred_check_branch
          %120 = sbr.rel (%p118) target = $region24
        $region23: #{tpu_custom_call.1} parent=19 // pred_region
          %s121 = sand.u32 %s28, 1
          %s122 = scalar_lea.sflag [#allocation6], %s121
          %s123 = sand.u32 %s28, 1
          %s124 = smul.addr %s123, 64
          %s125 = scalar_lea.vmem [#allocation5], %s124
          %s126 = smul.u32 8, %s18
          %s128 = ssub.s32 1024, 1024
          %129 = vsyncadd %s122, %s128
          %s130 = smul.addr %s126, 128
          %s131 = scalar_lea.hbm %s1, %s130
          %s132 = sshll.u32 %s125, 4
          %s133 = int_to_ptr.vmem [resolvable:$true] %s132
          %138 = dma.hbm_to_vmem [thread:$0]  %s131, 1024, %s133, %s122, 128, 128, 8
        $region24: #{tpu_custom_call.1} parent=19 // pred_fallthru
          _
      $region20: #{tpu_custom_call.1} parent=5 // pred_fallthru
        _
      %p139 = scmp.le.s32.totalorder 1, %s18
      %p140 = scmp.lt.s32.totalorder %s18, 3
      %p141 = pnand %p139, %p140
      %p142 = pneg %p141
      // Predicated region
      $region25: #{tpu_custom_call.1} parent=5 // pred_check
        _
      $region26: #{tpu_custom_call.1} parent=5 // pred_check_branch
        %144 = sbr.rel (%p141) target = $region28
      $region27: #{tpu_custom_call.1} parent=5 // pred_region
        %s145 = ssub.s32 %s18, 1
        %s146 = sand.u32 %s31, 1
        %s147 = scalar_lea.sflag [#allocation6], %s146
        %s148 = sand.u32 %s31, 1
        %s149 = smul.addr %s148, 64
        %s150 = scalar_lea.vmem [#allocation5], %s149
        // Predicated region
        $region29: #{tpu_custom_call.1} parent=27 // pred_check
          %p151 = pneg %p44
        $region30: #{tpu_custom_call.1} parent=27 // pred_check_branch
          %153 = sbr.rel (%p151) target = $region32
        $region31: #{tpu_custom_call.1} parent=27 // pred_region
          %154 = dma.done %s147, 1024
        $region32: #{tpu_custom_call.1} parent=27 // pred_fallthru
          _
        // Predicated region
        $region33: #{tpu_custom_call.1} parent=27 // pred_check
          %p155 = pneg %p65
        $region34: #{tpu_custom_call.1} parent=27 // pred_check_branch
          %157 = sbr.rel (%p155) target = $region36
        $region35: #{tpu_custom_call.1} parent=27 // pred_region
          %158 = dma.done [#allocation9], 2048
        $region36: #{tpu_custom_call.1} parent=27 // pred_fallthru
          _
        %s159 = sand.u32 %s31, 1
        %s160 = scalar_lea.sflag [#allocation6], %s159
        %s161 = sand.u32 %s31, 1
        %s162 = smul.addr %s161, 64
        %s163 = scalar_lea.vmem [#allocation5], %s162
        %p164 = pneg %p44
        %p165 = pneg %p41
        %p166 = pneg %p65
        %p167 = pneg %p62
        %p168 = pneg %p86
        %p169 = pneg %p83
        %s170 = smul.u32 8, %s23
        %v171 = vld [vmem:[%s150] sm:$0xff]
        %v172 = vld [vmem:[%s150 + $0x8] sm:$0xff]
        %v173 = vld [vmem:[%s150 + $0x10] sm:$0xff]
        %v174 = vld [vmem:[%s150 + $0x18] sm:$0xff]
        %v175 = vld [vmem:[%s150 + $0x20] sm:$0xff]
        %v176 = vld [vmem:[%s150 + $0x28] sm:$0xff]
        %v177 = vld [vmem:[%s150 + $0x30] sm:$0xff]
        %v178 = vld [vmem:[%s150 + $0x38] sm:$0xff]
        %v179 = vrot.slane %v171, 4
        %v180 = vadd.f32 %v171, %v179
        %v181 = vrot.slane %v180, 2
        %v182 = vadd.f32 %v180, %v181
        %v183 = vrot.slane %v182, 1
        %v184 = vadd.f32 %v182, %v183
        %v185 = vrot.slane %v172, 4
        %v186 = vadd.f32 %v172, %v185
        %v187 = vrot.slane %v186, 2
        %v188 = vadd.f32 %v186, %v187
        %v189 = vrot.slane %v188, 1
        %v190 = vadd.f32 %v188, %v189
        %v191 = vrot.slane %v173, 4
        %v192 = vadd.f32 %v173, %v191
        %v193 = vrot.slane %v192, 2
        %v194 = vadd.f32 %v192, %v193
        %v195 = vrot.slane %v194, 1
        %v196 = vadd.f32 %v194, %v195
        %v197 = vrot.slane %v174, 4
        %v198 = vadd.f32 %v174, %v197
        %v199 = vrot.slane %v198, 2
        %v200 = vadd.f32 %v198, %v199
        %v201 = vrot.slane %v200, 1
        %v202 = vadd.f32 %v200, %v201
        %v203 = vrot.slane %v175, 4
        %v204 = vadd.f32 %v175, %v203
        %v205 = vrot.slane %v204, 2
        %v206 = vadd.f32 %v204, %v205
        %v207 = vrot.slane %v206, 1
        %v208 = vadd.f32 %v206, %v207
        %v209 = vrot.slane %v176, 4
        %v210 = vadd.f32 %v176, %v209
        %v211 = vrot.slane %v210, 2
        %v212 = vadd.f32 %v210, %v211
        %v213 = vrot.slane %v212, 1
        %v214 = vadd.f32 %v212, %v213
        %v215 = vrot.slane %v177, 4
        %v216 = vadd.f32 %v177, %v215
        %v217 = vrot.slane %v216, 2
        %v218 = vadd.f32 %v216, %v217
        %v219 = vrot.slane %v218, 1
        %v220 = vadd.f32 %v218, %v219
        %v221 = vrot.slane %v178, 4
        %v222 = vadd.f32 %v178, %v221
        %v223 = vrot.slane %v222, 2
        %v224 = vadd.f32 %v222, %v223
        %v225 = vrot.slane %v224, 1
        %v226 = vadd.f32 %v224, %v225
        %v227 = vld [vmem:[#allocation8] sm:$0xff]
        %v228 = vld [vmem:[#allocation8 + $0x8] sm:$0xff]
        %v229 = vld [vmem:[#allocation8 + $0x10] sm:$0xff]
        %v230 = vld [vmem:[#allocation8 + $0x18] sm:$0xff]
        %v231 = vld [vmem:[#allocation8 + $0x20] sm:$0xff]
        %v232 = vld [vmem:[#allocation8 + $0x28] sm:$0xff]
        %v233 = vld [vmem:[#allocation8 + $0x30] sm:$0xff]
        %v234 = vld [vmem:[#allocation8 + $0x38] sm:$0xff]
        %v235 = vld [vmem:[#allocation8 + $0x40] sm:$0xff]
        %v236 = vld [vmem:[#allocation8 + $0x48] sm:$0xff]
        %v237 = vld [vmem:[#allocation8 + $0x50] sm:$0xff]
        %v238 = vld [vmem:[#allocation8 + $0x58] sm:$0xff]
        %v239 = vld [vmem:[#allocation8 + $0x60] sm:$0xff]
        %v240 = vld [vmem:[#allocation8 + $0x68] sm:$0xff]
        %v241 = vld [vmem:[#allocation8 + $0x70] sm:$0xff]
        %v242 = vld [vmem:[#allocation8 + $0x78] sm:$0xff]
        %vm251 = vcmask 1041409
        %v252 = vsel %vm251, %v190, %v184
        %vm253 = vcmask 1042434
        %v254 = vsel %vm253, %v196, %v252
        %vm255 = vcmask 1043459
        %v256 = vsel %vm255, %v202, %v254
        %vm257 = vcmask 1044484
        %v258 = vsel %vm257, %v208, %v256
        %vm259 = vcmask 1045509
        %v260 = vsel %vm259, %v214, %v258
        %vm261 = vcmask 1046534
        %v262 = vsel %vm261, %v220, %v260
        %vm263 = vcmask 1047559
        %v264 = vsel %vm263, %v226, %v262
        %266 = vmatprep.subr.mxu0 0.0
        %267 = vmatpush1.msra.mxu0 %v242
        %268 = vmatprep.subr.mxu0 0.0
        %269 = vmatpush1.msra.mxu0 %v241
        %270 = vmatprep.subr.mxu0 0.0
        %271 = vmatpush1.msra.mxu0 %v240
        %272 = vmatprep.subr.mxu0 0.0
        %273 = vmatpush1.msra.mxu0 %v239
        %274 = vmatprep.subr.mxu0 0.0
        %275 = vmatpush1.msra.mxu0 %v238
        %276 = vmatprep.subr.mxu0 0.0
        %277 = vmatpush1.msra.mxu0 %v237
        %278 = vmatprep.subr.mxu0 0.0
        %279 = vmatpush1.msra.mxu0 %v236
        %280 = vmatprep.subr.mxu0 0.0
        %281 = vmatpush1.msra.mxu0 %v235
        %282 = vmatprep.subr.mxu0 0.0
        %283 = vmatpush1.msra.mxu0 %v234
        %284 = vmatprep.subr.mxu0 0.0
        %285 = vmatpush1.msra.mxu0 %v233
        %286 = vmatprep.subr.mxu0 0.0
        %287 = vmatpush1.msra.mxu0 %v232
        %288 = vmatprep.subr.mxu0 0.0
        %289 = vmatpush1.msra.mxu0 %v231
        %290 = vmatprep.subr.mxu0 0.0
        %291 = vmatpush1.msra.mxu0 %v230
        %292 = vmatprep.subr.mxu0 0.0
        %293 = vmatpush1.msra.mxu0 %v229
        %294 = vmatprep.subr.mxu0 0.0
        %295 = vmatpush1.msra.mxu0 %v228
        %296 = vmatprep.subr.mxu0 0.0
        %297 = vmatpush1.msra.mxu0 %v227
        %298 = vmatprep.subr.mxu0 0.0
        %299 = vmatpush2.msra.mxu0 0.0
        %300 = vmatprep.subr.mxu0 0.0
        %301 = vmatpush2.msra.mxu0 0.0
        %302 = vmatprep.subr.mxu0 0.0
        %303 = vmatpush2.msra.mxu0 0.0
        %304 = vmatprep.subr.mxu0 0.0
        %305 = vmatpush2.msra.mxu0 0.0
        %306 = vmatprep.subr.mxu0 0.0
        %307 = vmatpush2.msra.mxu0 0.0
        %308 = vmatprep.subr.mxu0 0.0
        %309 = vmatpush2.msra.mxu0 0.0
        %310 = vmatprep.subr.mxu0 0.0
        %311 = vmatpush2.msra.mxu0 0.0
        %312 = vmatprep.subr.mxu0 0.0
        %313 = vmatpush2.msra.mxu0 0.0
        %314 = vmatprep.subr.mxu0 0.0
        %315 = vmatpush2.msra.mxu0 0.0
        %316 = vmatprep.subr.mxu0 0.0
        %317 = vmatpush2.msra.mxu0 0.0
        %318 = vmatprep.subr.mxu0 0.0
        %319 = vmatpush2.msra.mxu0 0.0
        %320 = vmatprep.subr.mxu0 0.0
        %321 = vmatpush2.msra.mxu0 0.0
        %322 = vmatprep.subr.mxu0 0.0
        %323 = vmatpush2.msra.mxu0 0.0
        %324 = vmatprep.subr.mxu0 0.0
        %325 = vmatpush2.msra.mxu0 0.0
        %326 = vmatprep.subr.mxu0 0.0
        %327 = vmatpush2.msra.mxu0 0.0
        %328 = vmatprep.subr.mxu0 0.0
        %329 = vmatpush2.msra.mxu0 0.0
        %330 = vmatprep.mubr.f32.mxu0 0.0
        %331 = vmatmul.mubr.f32.gmra.mxu0 %v264
        %v332 = vpop.f32.mrf.mxu0
        %v333 = vadd.f32 0.0, %v332
        %v334 = vpop.f32.mrf.mxu0
        %335 = vdwg.mxu0
        %s336 = smul.u32 %s23, 8
        %s337 = scalar_lea.vmem [#allocation2], %s336
        %338 = vst [vmem:[%s337] sm:$0xff] %v333
        %p339 = scmp.eq.s32.totalorder %s23, 1
        // Predicated region
        $region37: #{tpu_custom_call.1} parent=27 // pred_check
          %p340 = pneg %p339
        $region38: #{tpu_custom_call.1} parent=27 // pred_check_branch
          %342 = sbr.rel (%p340) target = $region40
        $region39: #{tpu_custom_call.1} parent=27 // pred_region
          %s343 = sld [smem:[#allocation4]]
          %s344 = smul.u32 %s343, 2
          %s345 = scalar_lea.vmem [#allocation2], %s344
          %v346 = vld [vmem:[%s345] sm:$0x3]
          %347 = vst [vmem:[#allocation10] sm:$0x3] %v346
          %s348 = sld [smem:[#allocation4 + $0x1]]
          %s349 = smul.u32 %s348, 2
          %s350 = scalar_lea.vmem [#allocation2], %s349
          %v351 = vld [vmem:[%s350] sm:$0x3]
          %s352 = scalar_lea.vmem [#allocation10], 2
          %353 = vst [vmem:[%s352] sm:$0x3] %v351
          %s354 = sld [smem:[#allocation4 + $0x2]]
          %s355 = smul.u32 %s354, 2
          %s356 = scalar_lea.vmem [#allocation2], %s355
          %v357 = vld [vmem:[%s356] sm:$0x3]
          %s358 = scalar_lea.vmem [#allocation10], 4
          %359 = vst [vmem:[%s358] sm:$0x3] %v357
          %s360 = sld [smem:[#allocation4 + $0x3]]
          %s361 = smul.u32 %s360, 2
          %s362 = scalar_lea.vmem [#allocation2], %s361
          %v363 = vld [vmem:[%s362] sm:$0x3]
          %s364 = scalar_lea.vmem [#allocation10], 6
          %365 = vst [vmem:[%s364] sm:$0x3] %v363
        $region40: #{tpu_custom_call.1} parent=27 // pred_fallthru
          _
        // Predicated region
        $region41: #{tpu_custom_call.1} parent=27 // pred_check
          %p366 = pneg %p83
        $region42: #{tpu_custom_call.1} parent=27 // pred_check_branch
          %368 = sbr.rel (%p366) target = $region44
        $region43: #{tpu_custom_call.1} parent=27 // pred_region
          %s370 = ssub.s32 128, 128
          %371 = vsyncadd [#allocation7], %s370
          %s372 = sshll.u32 [#allocation10], 4
          %s373 = int_to_ptr.vmem [resolvable:$true] %s372
          %378 = dma.vmem_to_hbm [thread:$0]  %s373, 128, %s3, [#allocation7], 32, 32, 2
        $region44: #{tpu_custom_call.1} parent=27 // pred_fallthru
          _
        // Predicated region
        $region45: #{tpu_custom_call.1} parent=27 // pred_check
          %p379 = pneg %p83
        $region46: #{tpu_custom_call.1} parent=27 // pred_check_branch
          %381 = sbr.rel (%p379) target = $region48
        $region47: #{tpu_custom_call.1} parent=27 // pred_region
          %382 = dma.done [#allocation7], 128
        $region48: #{tpu_custom_call.1} parent=27 // pred_fallthru
          _
      $region28: #{tpu_custom_call.1} parent=5 // pred_fallthru
        _
      %p383 = scmp.le.s32.totalorder 2, %s18
      // Predicated region
      $region49: #{tpu_custom_call.1} parent=5 // pred_check
        %p384 = pneg %p383
      $region50: #{tpu_custom_call.1} parent=5 // pred_check_branch
        %386 = sbr.rel (%p384) target = $region52
      $region51: #{tpu_custom_call.1} parent=5 // pred_region
        %s387 = ssub.s32 %s18, 2
      $region52: #{tpu_custom_call.1} parent=5 // pred_fallthru
        _
    $region6: #{tpu_custom_call.1} parent=1 // loop_footer
      %s22 = sadd.s32 1, %s18
    $region7: #{tpu_custom_call.1} parent=1 // loop_footer_branch
      %17 = sbr.rel target = $region3
    $region8: #{tpu_custom_call.1} parent=1 // loop_exit
      _
    %388 = vsyncpa [#allocation6], 1
    %s389 = scalar_lea.sflag [#allocation6], 1
    %390 = vsyncpa %s389, 1
    %391 = vsyncpa [#allocation9], 1
    %392 = vsyncpa [#allocation7], 1
    %s393 = scalar_lea.sflag [#allocation7], 1
    %394 = vsyncpa %s393, 1

</llo_original>
